<compile_context>
chip_gen: v6e
topology: v6e:2x2x1
jax: 0.10.0
libtpu: 0.0.40
codegen_flags: <defaults>
</compile_context>

<pallas_src>
import functools

import jax
import jax.numpy as jnp
from jax import lax
from jax.experimental import pallas as pl
from jax.experimental.pallas import tpu as pltpu


def _round_up(x, m):
    return ((x + m - 1) // m) * m


def _choose_tile_b(batch):
    """Batch tile (lane width).

    256-multiples feed the full 256-wide MXU on v6e/v7x; 512 lanes amortize the
    ~0.35us per-grid-step overhead for big batches; keep >= 2 grid steps when
    the batch allows it so the "parallel" grid axis can shard across v7x's two
    TensorCores. VMEM footprint stays < 1 MiB even at 512 lanes.
    """
    b256 = _round_up(max(batch, 1), 256)
    if b256 >= 1024:
        return 512
    if b256 >= 512:
        return 256          # >= 2 grid steps for v7x megacore
    return b256             # tiny batches: a single 256-lane tile


def _make_kernel(state_dim, action_dim, n_latent_var):
    """Build the kernel with static dims / packed-buffer row offsets."""
    S, A, H = state_dim, action_dim, n_latent_var
    assert H % 8 == 0, "n_latent_var must be a multiple of 8 for clean tiling"
    ap = _round_up(A, 8)          # padded row-group for the action head

    def kernel(state_ref, action_ref, w_ref, b_ref, out_ref):
        x = state_ref[...]                         # (TB, S)  f32, natural layout
        act = action_ref[...]                      # (1, TB)  i32
        tb = act.shape[1]

        # ---- layer 1 (fused actor+critic): contract over S with the state
        # tile kept as (TB, S); result is (2H, TB) with batch on lanes.
        w1 = w_ref[0:2 * H, 0:S]                   # (2H, S)
        h = jnp.tanh(
            lax.dot_general(w1, x, (((1,), (1,)), ((), ())),
                            preferred_element_type=jnp.float32)
            + b_ref[0:2 * H, :])                   # (2H, TB)

        # ---- layer 2: block-diagonal [w2a 0; 0 w2v]  (2H, 2H)
        h = jnp.tanh(
            jnp.dot(w_ref[2 * H:4 * H, 0:2 * H], h,
                    preferred_element_type=jnp.float32)
            + b_ref[2 * H:4 * H, :])               # (2H, TB)

        # ---- layer 3: block-diagonal heads [w3a 0; 0 w3v]  (ap + 8, 2H)
        r3 = 4 * H
        out3 = (jnp.dot(w_ref[r3:r3 + ap + 8, 0:2 * H], h,
                        preferred_element_type=jnp.float32)
                + b_ref[r3:r3 + ap + 8, :])        # (ap + 8, TB)
        logits = out3[0:A, :]      # real actor rows only, sliced BEFORE reductions
        value = out3[ap:ap + 1, :]                 # (1, TB)

        # ---- softmax over actions (sublane axis); batch stays on lanes
        m = jnp.max(logits, axis=0, keepdims=True)             # (1, TB)
        z = logits - m
        e = jnp.exp(z)
        denom = jnp.sum(e, axis=0, keepdims=True)              # (1, TB)
        log_denom = jnp.log(denom)
        log_probs = z - log_denom                              # (A, TB)

        # Categorical.log_prob(action): one-hot reduce along the action axis
        row = lax.broadcasted_iota(jnp.int32, (A, tb), 0)
        onehot = (row == act).astype(jnp.float32)
        logp = jnp.sum(log_probs * onehot, axis=0, keepdims=True)

        # Categorical.entropy() without materializing probs:
        #   H = log(denom) - sum(e * z) / denom
        inv = pl.reciprocal(denom, approx=True)
        inv = inv * (2.0 - denom * inv)            # one Newton step -> ~f32 exact
        ent = log_denom - jnp.sum(e * z, axis=0, keepdims=True) * inv

        # single lane-dense store: rows 0/1/2 = log_prob / value / entropy
        out_ref[...] = jnp.concatenate([logp, value, ent], axis=0)

    return kernel


@functools.partial(jax.jit,
                   static_argnames=("state_dim", "action_dim", "n_latent_var"))
def actor_critic_evaluate(state, action, w_packed, b_packed, *,
                          state_dim, action_dim, n_latent_var):
    """state: (B, state_dim) f32, action: (B,) int -> (log_prob, value, entropy)."""
    kernel = _make_kernel(state_dim, action_dim, n_latent_var)
    B = state.shape[0]
    tile_b = _choose_tile_b(B)
    b_pad = _round_up(max(B, 1), tile_b)
    pad = b_pad - B

    # No host-side transpose: state stays (B_pad, S); the transpose is folded
    # into the layer-1 dot_general inside the kernel. Only a cheap batch pad.
    state_p = jnp.pad(state.astype(jnp.float32), ((0, pad), (0, 0)))   # (B_pad, S)
    action_p = jnp.pad(action.astype(jnp.int32), (0, pad)).reshape(1, b_pad)

    S = state_dim
    grid = (b_pad // tile_b,)

    out = pl.pallas_call(
        kernel,
        out_shape=jax.ShapeDtypeStruct((3, b_pad), jnp.float32),
        grid=grid,
        in_specs=[
            pl.BlockSpec((tile_b, S), lambda i: (i, 0)),        # state tile, natural layout
            pl.BlockSpec((1, tile_b), lambda i: (0, i)),        # action tile
            pl.BlockSpec(w_packed.shape, lambda i: (0, 0)),     # weights: VMEM-resident
            pl.BlockSpec(b_packed.shape, lambda i: (0, 0)),     # biases:  VMEM-resident
        ],
        out_specs=pl.BlockSpec((3, tile_b), lambda i: (0, i)),  # packed lane-dense slab
        compiler_params=pltpu.CompilerParams(
            dimension_semantics=("parallel",)),                 # shards tiles across TCs on v7x
    )(state_p, action_p, w_packed, b_packed)

    # row 0 = log_prob, row 1 = squeeze(value), row 2 = entropy
    return out[0, :B], out[1, :B], out[2, :B]


def init_params(key, state_dim, action_dim, n_latent_var):
    """nn.Linear default init + set_init (last Linear of each head: w*=0.1, b*=0).
    Weights stored PyTorch-style (out, in)."""
    def linear(k, fan_in, fan_out):
        kw, kb = jax.random.split(k)
        bound = 1.0 / jnp.sqrt(fan_in)
        w = jax.random.uniform(kw, (fan_out, fan_in), jnp.float32, -bound, bound)
        b = jax.random.uniform(kb, (fan_out,), jnp.float32, -bound, bound)
        return w, b

    ks = jax.random.split(key, 6)
    p = {}
    p["w1a"], p["b1a"] = linear(ks[0], state_dim, n_latent_var)
    p["w2a"], p["b2a"] = linear(ks[1], n_latent_var, n_latent_var)
    w3a, b3a = linear(ks[2], n_latent_var, action_dim)
    p["w3a"], p["b3a"] = w3a * 0.1, b3a * 0.0
    p["w1v"], p["b1v"] = linear(ks[3], state_dim, n_latent_var)
    p["w2v"], p["b2v"] = linear(ks[4], n_latent_var, n_latent_var)
    w3v, b3v = linear(ks[5], n_latent_var, 1)
    p["w3v"], p["b3v"] = w3v * 0.1, b3v * 0.0
    return p


def pack_params(p, state_dim, action_dim, n_latent_var):
    """Pack all 6 Linear layers into one weight buffer + one bias buffer.

    Row layout (8-aligned groups, weights (out, in)), block-diagonal fusion:
      [0, 2H)             fused layer-1 [w1a ; w1v]                 (cols 0:S)
      [2H, 4H)            block-diag layer-2 [w2a 0; 0 w2v]         (cols 0:2H)
      [4H, 4H+ap+8)       block-diag heads  [w3a 0; 0 w3v], w3a in
                          rows [4H, 4H+A) cols [0:H), w3v in row
                          4H+ap cols [H:2H); padded rows are zero.
    """
    S, A, H = state_dim, action_dim, n_latent_var
    ap = _round_up(A, 8)
    rows = 4 * H + ap + 8
    cols = max(S, 2 * H)

    W = jnp.zeros((rows, cols), jnp.float32)
    b = jnp.zeros((rows, 1), jnp.float32)

    W = W.at[0:H, 0:S].set(p["w1a"])
    W = W.at[H:2 * H, 0:S].set(p["w1v"])
    W = W.at[2 * H:3 * H, 0:H].set(p["w2a"])
    W = W.at[3 * H:4 * H, H:2 * H].set(p["w2v"])
    W = W.at[4 * H:4 * H + A, 0:H].set(p["w3a"])
    W = W.at[4 * H + ap:4 * H + ap + 1, H:2 * H].set(p["w3v"])

    b = b.at[0:H, 0].set(p["b1a"])
    b = b.at[H:2 * H, 0].set(p["b1v"])
    b = b.at[2 * H:3 * H, 0].set(p["b2a"])
    b = b.at[3 * H:4 * H, 0].set(p["b2v"])
    b = b.at[4 * H:4 * H + A, 0].set(p["b3a"])
    b = b.at[4 * H + ap:4 * H + ap + 1, 0].set(p["b3v"])
    return W, b


def reference_evaluate(state, action, p):
    """Pure-JAX reference of ActorCritic.evaluate for a correctness check."""
    h = jnp.tanh(state @ p["w1a"].T + p["b1a"])
    h = jnp.tanh(h @ p["w2a"].T + p["b2a"])
    logits = h @ p["w3a"].T + p["b3a"]
    logz = jax.nn.log_softmax(logits, axis=-1)
    probs = jnp.exp(logz)
    logp = jnp.take_along_axis(logz, action[:, None], axis=-1)[:, 0]
    ent = -jnp.sum(probs * logz, axis=-1)
    v = jnp.tanh(state @ p["w1v"].T + p["b1v"])
    v = jnp.tanh(v @ p["w2v"].T + p["b2v"])
    value = (v @ p["w3v"].T + p["b3v"])[:, 0]
    return logp, value, ent


if __name__ == "__main__":
    STATE_DIM, ACTION_DIM, N_LATENT = 16, 4, 32

    key = jax.random.PRNGKey(0)
    k_params, k_state, k_action = jax.random.split(key, 3)

    params = init_params(k_params, STATE_DIM, ACTION_DIM, N_LATENT)
    w_packed, b_packed = pack_params(params, STATE_DIM, ACTION_DIM, N_LATENT)

    for B in (8, 1024):   # small tile path (single 256-lane tile) and 2x512-lane grid
        ks, ka = jax.random.split(jax.random.fold_in(key, B))
        state = jax.random.normal(ks, (B, STATE_DIM), jnp.float32)
        action = jax.random.randint(ka, (B,), 0, ACTION_DIM, jnp.int32)

        logp, value, ent = actor_critic_evaluate(
            state, action, w_packed, b_packed,
            state_dim=STATE_DIM, action_dim=ACTION_DIM, n_latent_var=N_LATENT)
        jax.block_until_ready((logp, value, ent))

        r_logp, r_value, r_ent = reference_evaluate(state, action, params)
        assert jnp.allclose(logp, r_logp, atol=1e-4, rtol=1e-4), f"log_prob mismatch (B={B})"
        assert jnp.allclose(value, r_value, atol=1e-4, rtol=1e-4), f"value mismatch (B={B})"
        assert jnp.allclose(ent, r_ent, atol=1e-4, rtol=1e-4), f"entropy mismatch (B={B})"

    print("KERNEL_OK")
</pallas_src>

<mosaic_0001>
module attributes {stable_mosaic.version = 11 : i64} {
  func.func @kernel(%arg0: i32, %arg1: memref<256x16xf32, #tpu.memory_space<vmem>>, %arg2: memref<1x256xi32, #tpu.memory_space<vmem>>, %arg3: memref<144x64xf32, #tpu.memory_space<vmem>>, %arg4: memref<144x1xf32, #tpu.memory_space<vmem>>, %arg5: memref<3x256xf32, #tpu.memory_space<vmem>>) attributes {dimension_semantics = [#tpu.dimension_semantics<parallel>], iteration_bounds = array<i64: 1>, scalar_prefetch = 0 : i64, scratch_operands = 0 : i64, tpu.core_type = #tpu.core_type<tc>, window_params = [{transform_indices = @transform_0, window_bounds = array<i64: 256, 16>}, {transform_indices = @transform_1, window_bounds = array<i64: 1, 256>}, {pipeline_mode = #tpu.pipeline_mode<synchronous>, transform_indices = @transform_2, window_bounds = array<i64: 144, 64>}, {pipeline_mode = #tpu.pipeline_mode<synchronous>, transform_indices = @transform_3, window_bounds = array<i64: 144, 1>}, {transform_indices = @transform_4, window_bounds = array<i64: 3, 256>}]} {
    %c0 = arith.constant 0 : index
    %c0_0 = arith.constant 0 : index
    %0 = vector.load %arg1[%c0, %c0_0] : memref<256x16xf32, #tpu.memory_space<vmem>>, vector<256x16xf32>
    %c0_1 = arith.constant 0 : index
    %c0_2 = arith.constant 0 : index
    %1 = vector.load %arg2[%c0_1, %c0_2] : memref<1x256xi32, #tpu.memory_space<vmem>>, vector<1x256xi32>
    %c0_3 = arith.constant 0 : index
    %c0_4 = arith.constant 0 : index
    %2 = vector.load %arg3[%c0_3, %c0_4] : memref<144x64xf32, #tpu.memory_space<vmem>>, vector<64x16xf32>
    %cst = arith.constant dense<0.000000e+00> : vector<64x256xf32>
    %3 = tpu.matmul %2, %0, %cst {dimension_numbers = #tpu.dot_dimension_numbers<[1], [1], [0], [0], [0, 0, 1, 0], [], []>} : vector<64x16xf32>, vector<256x16xf32>, vector<64x256xf32> -> vector<64x256xf32>
    %c0_5 = arith.constant 0 : index
    %c0_6 = arith.constant 0 : index
    %4 = vector.load %arg4[%c0_5, %c0_6] : memref<144x1xf32, #tpu.memory_space<vmem>>, vector<64x1xf32>
    %5 = vector.broadcast %4 : vector<64x1xf32> to vector<64x256xf32>
    %6 = arith.addf %3, %5 : vector<64x256xf32>
    %7 = math.tanh %6 : vector<64x256xf32>
    %c64 = arith.constant 64 : index
    %c0_7 = arith.constant 0 : index
    %8 = vector.load %arg3[%c64, %c0_7] : memref<144x64xf32, #tpu.memory_space<vmem>>, vector<64x64xf32>
    %cst_8 = arith.constant dense<0.000000e+00> : vector<64x256xf32>
    %9 = tpu.matmul %8, %7, %cst_8 {dimension_numbers = #tpu.dot_dimension_numbers<[1], [0], [0], [1], [0, 0, 1, 1], [], []>} : vector<64x64xf32>, vector<64x256xf32>, vector<64x256xf32> -> vector<64x256xf32>
    %c64_9 = arith.constant 64 : index
    %c0_10 = arith.constant 0 : index
    %10 = vector.load %arg4[%c64_9, %c0_10] : memref<144x1xf32, #tpu.memory_space<vmem>>, vector<64x1xf32>
    %11 = vector.broadcast %10 : vector<64x1xf32> to vector<64x256xf32>
    %12 = arith.addf %9, %11 : vector<64x256xf32>
    %13 = math.tanh %12 : vector<64x256xf32>
    %c128 = arith.constant 128 : index
    %c0_11 = arith.constant 0 : index
    %14 = vector.load %arg3[%c128, %c0_11] : memref<144x64xf32, #tpu.memory_space<vmem>>, vector<16x64xf32>
    %cst_12 = arith.constant dense<0.000000e+00> : vector<16x256xf32>
    %15 = tpu.matmul %14, %13, %cst_12 {dimension_numbers = #tpu.dot_dimension_numbers<[1], [0], [0], [1], [0, 0, 1, 1], [], []>} : vector<16x64xf32>, vector<64x256xf32>, vector<16x256xf32> -> vector<16x256xf32>
    %c128_13 = arith.constant 128 : index
    %c0_14 = arith.constant 0 : index
    %16 = vector.load %arg4[%c128_13, %c0_14] : memref<144x1xf32, #tpu.memory_space<vmem>>, vector<16x1xf32>
    %17 = vector.broadcast %16 : vector<16x1xf32> to vector<16x256xf32>
    %18 = arith.addf %15, %17 : vector<16x256xf32>
    %19 = vector.extract_strided_slice %18 {offsets = [0, 0], sizes = [4, 256], strides = [1, 1]} : vector<16x256xf32> to vector<4x256xf32>
    %20 = vector.extract_strided_slice %18 {offsets = [8, 0], sizes = [1, 256], strides = [1, 1]} : vector<16x256xf32> to vector<1x256xf32>
    %cst_15 = arith.constant dense<0xFF800000> : vector<256xf32>
    %21 = vector.multi_reduction <maximumf>, %19, %cst_15 [0] : vector<4x256xf32> to vector<256xf32>
    %22 = vector.shape_cast %21 : vector<256xf32> to vector<1x256xf32>
    %23 = vector.broadcast %22 : vector<1x256xf32> to vector<4x256xf32>
    %24 = arith.subf %19, %23 : vector<4x256xf32>
    %25 = math.exp %24 : vector<4x256xf32>
    %cst_16 = arith.constant dense<0.000000e+00> : vector<256xf32>
    %26 = vector.multi_reduction <add>, %25, %cst_16 [0] : vector<4x256xf32> to vector<256xf32>
    %27 = vector.shape_cast %26 : vector<256xf32> to vector<1x256xf32>
    %28 = math.log %27 : vector<1x256xf32>
    %29 = vector.broadcast %28 : vector<1x256xf32> to vector<4x256xf32>
    %30 = arith.subf %24, %29 : vector<4x256xf32>
    %31 = tpu.iota {dimensions = array<i32: 0>} : vector<4x256xi32>
    %32 = vector.broadcast %1 : vector<1x256xi32> to vector<4x256xi32>
    %33 = arith.cmpi eq, %31, %32 : vector<4x256xi32>
    %34 = arith.extui %33 : vector<4x256xi1> to vector<4x256xi32>
    %35 = arith.sitofp %34 : vector<4x256xi32> to vector<4x256xf32>
    %36 = arith.mulf %30, %35 : vector<4x256xf32>
    %cst_17 = arith.constant dense<0.000000e+00> : vector<256xf32>
    %37 = vector.multi_reduction <add>, %36, %cst_17 [0] : vector<4x256xf32> to vector<256xf32>
    %38 = vector.shape_cast %37 : vector<256xf32> to vector<1x256xf32>
    %39 = tpu.reciprocal %27 {approx = true} : vector<1x256xf32> -> vector<1x256xf32>
    %40 = arith.mulf %27, %39 : vector<1x256xf32>
    %cst_18 = arith.constant 2.000000e+00 : f32
    %41 = vector.broadcast %cst_18 : f32 to vector<1x256xf32>
    %42 = arith.subf %41, %40 : vector<1x256xf32>
    %43 = arith.mulf %39, %42 : vector<1x256xf32>
    %44 = arith.mulf %25, %24 : vector<4x256xf32>
    %cst_19 = arith.constant dense<0.000000e+00> : vector<256xf32>
    %45 = vector.multi_reduction <add>, %44, %cst_19 [0] : vector<4x256xf32> to vector<256xf32>
    %46 = vector.shape_cast %45 : vector<256xf32> to vector<1x256xf32>
    %47 = arith.mulf %46, %43 : vector<1x256xf32>
    %48 = arith.subf %28, %47 : vector<1x256xf32>
    %49 = tpu.concatenate %38, %20, %48 in 0 : vector<1x256xf32>, vector<1x256xf32>, vector<1x256xf32> -> vector<3x256xf32>
    %c0_20 = arith.constant 0 : index
    %c0_21 = arith.constant 0 : index
    %50 = vector.load %arg5[%c0_20, %c0_21] : memref<3x256xf32, #tpu.memory_space<vmem>>, vector<3x256xf32>
    tpu.vector_store %arg5[%c0_20, %c0_21], %49 {strides = array<i32>} : memref<3x256xf32, #tpu.memory_space<vmem>>, vector<3x256xf32>,
    return
  }
  func.func @transform_0(%arg0: i32) -> (i32, i32) {
    %c0_i32 = arith.constant 0 : i32
    %c0_i32_0 = arith.constant 0 : i32
    return %arg0, %c0_i32 : i32, i32
  }
  func.func @transform_1(%arg0: i32) -> (i32, i32) {
    %c0_i32 = arith.constant 0 : i32
    %c0_i32_0 = arith.constant 0 : i32
    return %c0_i32, %arg0 : i32, i32
  }
  func.func @transform_2(%arg0: i32) -> (i32, i32) {
    %c0_i32 = arith.constant 0 : i32
    %c0_i32_0 = arith.constant 0 : i32
    %c0_i32_1 = arith.constant 0 : i32
    return %c0_i32, %c0_i32_0 : i32, i32
  }
  func.func @transform_3(%arg0: i32) -> (i32, i32) {
    %c0_i32 = arith.constant 0 : i32
    %c0_i32_0 = arith.constant 0 : i32
    %c0_i32_1 = arith.constant 0 : i32
    return %c0_i32, %c0_i32_0 : i32, i32
  }
  func.func @transform_4(%arg0: i32) -> (i32, i32) {
    %c0_i32 = arith.constant 0 : i32
    %c0_i32_0 = arith.constant 0 : i32
    return %c0_i32, %arg0 : i32, i32
  }
}

</mosaic_0001>

<llo_original>
// kernel: actor_critic_evaluate.1
$region0: #{actor_critic_evaluate.1}
  #allocation0 [shape = 'u32[]', space=smem, size = 0x4, offset = 0x4, fixed_abs, tag = 'smem constant byte address 0x4 - core index']
  #allocation1 [shape = 'u32[144,128]{1,0:T(1,128)}', space=vmem, size = 0x12000, scoped, tag = 'internal scratch']
  %s0 = inlined_call_operand.vmem [shape: f32[256,16], index: 0, kind: input, shape index: {}]
  %s1 = inlined_call_operand.vmem [shape: s32[1,256], index: 1, kind: input, shape index: {}]
  %s2 = inlined_call_operand.vmem [shape: f32[144,64], index: 2, kind: input, shape index: {}]
  %s3 = inlined_call_operand.vmem [shape: f32[144,1], index: 3, kind: input, shape index: {}]
  %s4 = inlined_call_operand.vmem [shape: f32[3,256], index: 4, kind: output, shape index: {}]
  %s5 = sld [smem:[#allocation0]]
  $region26: #{actor_critic_evaluate.1} parent=0
    _
  %s7 = ssub.s32 1, %s5
  %s8 = scalar_select 0, %s7, %s5
  // Predicated region
  $region2: #{actor_critic_evaluate.1} parent=0 // pred_check
    _
  $region3: #{actor_critic_evaluate.1} parent=0 // pred_check_branch
    %10 = sbr.rel (0) target = $region5
  $region4: #{actor_critic_evaluate.1} parent=0 // pred_region
    _
  $region5: #{actor_critic_evaluate.1} parent=0 // pred_fallthru
    _
  // Predicated region
  $region6: #{actor_critic_evaluate.1} parent=0 // pred_check
    _
  $region7: #{actor_critic_evaluate.1} parent=0 // pred_check_branch
    %12 = sbr.rel (0) target = $region9
  $region8: #{actor_critic_evaluate.1} parent=0 // pred_region
    _
  $region9: #{actor_critic_evaluate.1} parent=0 // pred_fallthru
    _
  // Predicated region
  $region10: #{actor_critic_evaluate.1} parent=0 // pred_check
    _
  $region11: #{actor_critic_evaluate.1} parent=0 // pred_check_branch
    %14 = sbr.rel (0) target = $region13
  $region12: #{actor_critic_evaluate.1} parent=0 // pred_region
    _
  $region13: #{actor_critic_evaluate.1} parent=0 // pred_fallthru
    _
  // Predicated region
  $region14: #{actor_critic_evaluate.1} parent=0 // pred_check
    _
  $region15: #{actor_critic_evaluate.1} parent=0 // pred_check_branch
    %16 = sbr.rel (0) target = $region17
  $region16: #{actor_critic_evaluate.1} parent=0 // pred_region
    _
  $region17: #{actor_critic_evaluate.1} parent=0 // pred_fallthru
    _
  %v17 = vld [vmem:[%s0] sm:$0xff]
  %v18 = vld [vmem:[%s0 + $0x8] sm:$0xff]
  %v19 = vld [vmem:[%s0 + $0x10] sm:$0xff]
  %v20 = vld [vmem:[%s0 + $0x18] sm:$0xff]
  %v21 = vld [vmem:[%s0 + $0x20] sm:$0xff]
  %v22 = vld [vmem:[%s0 + $0x28] sm:$0xff]
  %v23 = vld [vmem:[%s0 + $0x30] sm:$0xff]
  %v24 = vld [vmem:[%s0 + $0x38] sm:$0xff]
  %v25 = vld [vmem:[%s0 + $0x40] sm:$0xff]
  %v26 = vld [vmem:[%s0 + $0x48] sm:$0xff]
  %v27 = vld [vmem:[%s0 + $0x50] sm:$0xff]
  %v28 = vld [vmem:[%s0 + $0x58] sm:$0xff]
  %v29 = vld [vmem:[%s0 + $0x60] sm:$0xff]
  %v30 = vld [vmem:[%s0 + $0x68] sm:$0xff]
  %v31 = vld [vmem:[%s0 + $0x70] sm:$0xff]
  %v32 = vld [vmem:[%s0 + $0x78] sm:$0xff]
  %v33 = vld [vmem:[%s0 + $0x80] sm:$0xff]
  %v34 = vld [vmem:[%s0 + $0x88] sm:$0xff]
  %v35 = vld [vmem:[%s0 + $0x90] sm:$0xff]
  %v36 = vld [vmem:[%s0 + $0x98] sm:$0xff]
  %v37 = vld [vmem:[%s0 + $0xa0] sm:$0xff]
  %v38 = vld [vmem:[%s0 + $0xa8] sm:$0xff]
  %v39 = vld [vmem:[%s0 + $0xb0] sm:$0xff]
  %v40 = vld [vmem:[%s0 + $0xb8] sm:$0xff]
  %v41 = vld [vmem:[%s0 + $0xc0] sm:$0xff]
  %v42 = vld [vmem:[%s0 + $0xc8] sm:$0xff]
  %v43 = vld [vmem:[%s0 + $0xd0] sm:$0xff]
  %v44 = vld [vmem:[%s0 + $0xd8] sm:$0xff]
  %v45 = vld [vmem:[%s0 + $0xe0] sm:$0xff]
  %v46 = vld [vmem:[%s0 + $0xe8] sm:$0xff]
  %v47 = vld [vmem:[%s0 + $0xf0] sm:$0xff]
  %v48 = vld [vmem:[%s0 + $0xf8] sm:$0xff]
  %v49 = vld [vmem:[%s1] sm:$0x3]
  %v50 = vld [vmem:[%s2] sm:$0xff]
  %v51 = vld [vmem:[%s2 + $0x8] sm:$0xff]
  %v52 = vld [vmem:[%s2 + $0x10] sm:$0xff]
  %v53 = vld [vmem:[%s2 + $0x18] sm:$0xff]
  %v54 = vld [vmem:[%s2 + $0x20] sm:$0xff]
  %v55 = vld [vmem:[%s2 + $0x28] sm:$0xff]
  %v56 = vld [vmem:[%s2 + $0x30] sm:$0xff]
  %v57 = vld [vmem:[%s2 + $0x38] sm:$0xff]
  %v58 = vld [vmem:[%s3] sm:$0xff]
  %v59 = vld [vmem:[%s3 + $0x8] sm:$0xff]
  %v60 = vld [vmem:[%s3 + $0x10] sm:$0xff]
  %v61 = vld [vmem:[%s3 + $0x18] sm:$0xff]
  %v62 = vld [vmem:[%s3 + $0x20] sm:$0xff]
  %v63 = vld [vmem:[%s3 + $0x28] sm:$0xff]
  %v64 = vld [vmem:[%s3 + $0x30] sm:$0xff]
  %v65 = vld [vmem:[%s3 + $0x38] sm:$0xff]
  %67 = vset.pattern.permute.xlu0 0
  %68 = vperm.xlu0 %67, %v58
  %v69 = vpop.permute.xlu0 %68
  %72 = vset.pattern.permute.xlu0 0
  %73 = vperm.xlu0 %72, %v59
  %v74 = vpop.permute.xlu0 %73
  %77 = vset.pattern.permute.xlu0 0
  %78 = vperm.xlu0 %77, %v60
  %v79 = vpop.permute.xlu0 %78
  %82 = vset.pattern.permute.xlu0 0
  %83 = vperm.xlu0 %82, %v61
  %v84 = vpop.permute.xlu0 %83
  %87 = vset.pattern.permute.xlu0 0
  %88 = vperm.xlu0 %87, %v62
  %v89 = vpop.permute.xlu0 %88
  %92 = vset.pattern.permute.xlu0 0
  %93 = vperm.xlu0 %92, %v63
  %v94 = vpop.permute.xlu0 %93
  %97 = vset.pattern.permute.xlu0 0
  %98 = vperm.xlu0 %97, %v64
  %v99 = vpop.permute.xlu0 %98
  %102 = vset.pattern.permute.xlu0 0
  %103 = vperm.xlu0 %102, %v65
  %v104 = vpop.permute.xlu0 %103
  %vm106 = vcmask 130048
  %v108 = vsel %vm106, %v50, 0
  %v111 = vsel %vm106, %v51, 0
  %v114 = vsel %vm106, %v52, 0
  %v117 = vsel %vm106, %v53, 0
  %v120 = vsel %vm106, %v54, 0
  %v123 = vsel %vm106, %v55, 0
  %v126 = vsel %vm106, %v56, 0
  %v129 = vsel %vm106, %v57, 0
  %v132 = vsel %vm106, %v17, 0
  %v135 = vsel %vm106, %v18, 0
  %v138 = vsel %vm106, %v19, 0
  %v141 = vsel %vm106, %v20, 0
  %v144 = vsel %vm106, %v21, 0
  %v147 = vsel %vm106, %v22, 0
  %v150 = vsel %vm106, %v23, 0
  %v153 = vsel %vm106, %v24, 0
  %v156 = vsel %vm106, %v25, 0
  %v159 = vsel %vm106, %v26, 0
  %v162 = vsel %vm106, %v27, 0
  %v165 = vsel %vm106, %v28, 0
  %v168 = vsel %vm106, %v29, 0
  %v171 = vsel %vm106, %v30, 0
  %v174 = vsel %vm106, %v31, 0
  %v177 = vsel %vm106, %v32, 0
  %v180 = vsel %vm106, %v33, 0
  %v183 = vsel %vm106, %v34, 0
  %v186 = vsel %vm106, %v35, 0
  %v189 = vsel %vm106, %v36, 0
  %v192 = vsel %vm106, %v37, 0
  %v195 = vsel %vm106, %v38, 0
  %v198 = vsel %vm106, %v39, 0
  %v201 = vsel %vm106, %v40, 0
  %v204 = vsel %vm106, %v41, 0
  %v207 = vsel %vm106, %v42, 0
  %v210 = vsel %vm106, %v43, 0
  %v213 = vsel %vm106, %v44, 0
  %v216 = vsel %vm106, %v45, 0
  %v219 = vsel %vm106, %v46, 0
  %v222 = vsel %vm106, %v47, 0
  %v225 = vsel %vm106, %v48, 0
  %227 = vmatprep.subr.mxu0 0.0
  %228 = vmatpush1.xpose.msra.mxu0 %v177
  %229 = vmatprep.subr.mxu0 0.0
  %230 = vmatpush1.xpose.msra.mxu0 %v174
  %231 = vmatprep.subr.mxu0 0.0
  %232 = vmatpush1.xpose.msra.mxu0 %v171
  %233 = vmatprep.subr.mxu0 0.0
  %234 = vmatpush1.xpose.msra.mxu0 %v168
  %235 = vmatprep.subr.mxu0 0.0
  %236 = vmatpush1.xpose.msra.mxu0 %v165
  %237 = vmatprep.subr.mxu0 0.0
  %238 = vmatpush1.xpose.msra.mxu0 %v162
  %239 = vmatprep.subr.mxu0 0.0
  %240 = vmatpush1.xpose.msra.mxu0 %v159
  %241 = vmatprep.subr.mxu0 0.0
  %242 = vmatpush1.xpose.msra.mxu0 %v156
  %243 = vmatprep.subr.mxu0 0.0
  %244 = vmatpush1.xpose.msra.mxu0 %v153
  %245 = vmatprep.subr.mxu0 0.0
  %246 = vmatpush1.xpose.msra.mxu0 %v150
  %247 = vmatprep.subr.mxu0 0.0
  %248 = vmatpush1.xpose.msra.mxu0 %v147
  %249 = vmatprep.subr.mxu0 0.0
  %250 = vmatpush1.xpose.msra.mxu0 %v144
  %251 = vmatprep.subr.mxu0 0.0
  %252 = vmatpush1.xpose.msra.mxu0 %v141
  %253 = vmatprep.subr.mxu0 0.0
  %254 = vmatpush1.xpose.msra.mxu0 %v138
  %255 = vmatprep.subr.mxu0 0.0
  %256 = vmatpush1.xpose.msra.mxu0 %v135
  %257 = vmatprep.subr.mxu0 0.0
  %258 = vmatpush1.xpose.msra.mxu0 %v132
  %259 = vmatprep.subr.mxu0 0.0
  %260 = vmatpush2.xpose.msra.mxu0 %v225
  %261 = vmatprep.subr.mxu0 0.0
  %262 = vmatpush2.xpose.msra.mxu0 %v222
  %263 = vmatprep.subr.mxu0 0.0
  %264 = vmatpush2.xpose.msra.mxu0 %v219
  %265 = vmatprep.subr.mxu0 0.0
  %266 = vmatpush2.xpose.msra.mxu0 %v216
  %267 = vmatprep.subr.mxu0 0.0
  %268 = vmatpush2.xpose.msra.mxu0 %v213
  %269 = vmatprep.subr.mxu0 0.0
  %270 = vmatpush2.xpose.msra.mxu0 %v210
  %271 = vmatprep.subr.mxu0 0.0
  %272 = vmatpush2.xpose.msra.mxu0 %v207
  %273 = vmatprep.subr.mxu0 0.0
  %274 = vmatpush2.xpose.msra.mxu0 %v204
  %275 = vmatprep.subr.mxu0 0.0
  %276 = vmatpush2.xpose.msra.mxu0 %v201
  %277 = vmatprep.subr.mxu0 0.0
  %278 = vmatpush2.xpose.msra.mxu0 %v198
  %279 = vmatprep.subr.mxu0 0.0
  %280 = vmatpush2.xpose.msra.mxu0 %v195
  %281 = vmatprep.subr.mxu0 0.0
  %282 = vmatpush2.xpose.msra.mxu0 %v192
  %283 = vmatprep.subr.mxu0 0.0
  %284 = vmatpush2.xpose.msra.mxu0 %v189
  %285 = vmatprep.subr.mxu0 0.0
  %286 = vmatpush2.xpose.msra.mxu0 %v186
  %287 = vmatprep.subr.mxu0 0.0
  %288 = vmatpush2.xpose.msra.mxu0 %v183
  %289 = vmatprep.subr.mxu0 0.0
  %290 = vmatpush2.xpose.msra.mxu0 %v180
  %291 = vmatprep.mubr.f32.mxu0 0.0
  %292 = vmatmul.mubr.f32.gmra.mxu0 %v108
  %v293 = vpop.f32.mrf.mxu0
  %v294 = vadd.f32 %v69, %v293
  %v295 = vpop.f32.mrf.mxu0
  %v296 = vadd.f32 %v69, %v295
  %297 = vmatprep.mubr.f32.mxu0 0.0
  %298 = vmatmul.mubr.f32.gmra.mxu0 %v111
  %v299 = vpop.f32.mrf.mxu0
  %v300 = vadd.f32 %v74, %v299
  %v301 = vpop.f32.mrf.mxu0
  %v302 = vadd.f32 %v74, %v301
  %303 = vmatprep.mubr.f32.mxu0 0.0
  %304 = vmatmul.mubr.f32.gmra.mxu0 %v114
  %v305 = vpop.f32.mrf.mxu0
  %v306 = vadd.f32 %v79, %v305
  %v307 = vpop.f32.mrf.mxu0
  %v308 = vadd.f32 %v79, %v307
  %309 = vmatprep.mubr.f32.mxu0 0.0
  %310 = vmatmul.mubr.f32.gmra.mxu0 %v117
  %v311 = vpop.f32.mrf.mxu0
  %v312 = vadd.f32 %v84, %v311
  %v313 = vpop.f32.mrf.mxu0
  %v314 = vadd.f32 %v84, %v313
  %315 = vmatprep.mubr.f32.mxu0 0.0
  %316 = vmatmul.mubr.f32.gmra.mxu0 %v120
  %v317 = vpop.f32.mrf.mxu0
  %v318 = vadd.f32 %v89, %v317
  %v319 = vpop.f32.mrf.mxu0
  %v320 = vadd.f32 %v89, %v319
  %321 = vmatprep.mubr.f32.mxu0 0.0
  %322 = vmatmul.mubr.f32.gmra.mxu0 %v123
  %v323 = vpop.f32.mrf.mxu0
  %v324 = vadd.f32 %v94, %v323
  %v325 = vpop.f32.mrf.mxu0
  %v326 = vadd.f32 %v94, %v325
  %327 = vmatprep.mubr.f32.mxu0 0.0
  %328 = vmatmul.mubr.f32.gmra.mxu0 %v126
  %v329 = vpop.f32.mrf.mxu0
  %v330 = vadd.f32 %v99, %v329
  %v331 = vpop.f32.mrf.mxu0
  %v332 = vadd.f32 %v99, %v331
  %333 = vmatprep.mubr.f32.mxu0 0.0
  %334 = vmatmul.mubr.f32.gmra.mxu0 %v129
  %v335 = vpop.f32.mrf.mxu0
  %v336 = vadd.f32 %v104, %v335
  %v337 = vpop.f32.mrf.mxu0
  %v338 = vadd.f32 %v104, %v337
  %339 = vdwg.mxu0
  %v340 = vtanh.pop %v294
  %v341 = vtanh.pop %v296
  %v342 = vtanh.pop %v300
  %v343 = vtanh.pop %v302
  %v344 = vtanh.pop %v306
  %v345 = vtanh.pop %v308
  %v346 = vtanh.pop %v312
  %v347 = vtanh.pop %v314
  %v348 = vtanh.pop %v318
  %v349 = vtanh.pop %v320
  %v350 = vtanh.pop %v324
  %v351 = vtanh.pop %v326
  %v352 = vtanh.pop %v330
  %v353 = vtanh.pop %v332
  %v354 = vtanh.pop %v336
  %v355 = vtanh.pop %v338
  %v356 = vld [vmem:[%s2 + $0x40] sm:$0xff]
  %v357 = vld [vmem:[%s2 + $0x48] sm:$0xff]
  %v358 = vld [vmem:[%s2 + $0x50] sm:$0xff]
  %v359 = vld [vmem:[%s2 + $0x58] sm:$0xff]
  %v360 = vld [vmem:[%s2 + $0x60] sm:$0xff]
  %v361 = vld [vmem:[%s2 + $0x68] sm:$0xff]
  %v362 = vld [vmem:[%s2 + $0x70] sm:$0xff]
  %v363 = vld [vmem:[%s2 + $0x78] sm:$0xff]
  %v364 = vld [vmem:[%s3 + $0x40] sm:$0xff]
  %v365 = vld [vmem:[%s3 + $0x48] sm:$0xff]
  %v366 = vld [vmem:[%s3 + $0x50] sm:$0xff]
  %v367 = vld [vmem:[%s3 + $0x58] sm:$0xff]
  %v368 = vld [vmem:[%s3 + $0x60] sm:$0xff]
  %v369 = vld [vmem:[%s3 + $0x68] sm:$0xff]
  %v370 = vld [vmem:[%s3 + $0x70] sm:$0xff]
  %v371 = vld [vmem:[%s3 + $0x78] sm:$0xff]
  %373 = vset.pattern.permute.xlu0 0
  %374 = vperm.xlu0 %373, %v364
  %v375 = vpop.permute.xlu0 %374
  %378 = vset.pattern.permute.xlu0 0
  %379 = vperm.xlu0 %378, %v365
  %v380 = vpop.permute.xlu0 %379
  %383 = vset.pattern.permute.xlu0 0
  %384 = vperm.xlu0 %383, %v366
  %v385 = vpop.permute.xlu0 %384
  %388 = vset.pattern.permute.xlu0 0
  %389 = vperm.xlu0 %388, %v367
  %v390 = vpop.permute.xlu0 %389
  %393 = vset.pattern.permute.xlu0 0
  %394 = vperm.xlu0 %393, %v368
  %v395 = vpop.permute.xlu0 %394
  %398 = vset.pattern.permute.xlu0 0
  %399 = vperm.xlu0 %398, %v369
  %v400 = vpop.permute.xlu0 %399
  %403 = vset.pattern.permute.xlu0 0
  %404 = vperm.xlu0 %403, %v370
  %v405 = vpop.permute.xlu0 %404
  %408 = vset.pattern.permute.xlu0 0
  %409 = vperm.xlu0 %408, %v371
  %v410 = vpop.permute.xlu0 %409
  %vm412 = vcmask 523264
  %v414 = vsel %vm412, %v356, 0
  %v417 = vsel %vm412, %v357, 0
  %v420 = vsel %vm412, %v358, 0
  %v423 = vsel %vm412, %v359, 0
  %v426 = vsel %vm412, %v360, 0
  %v429 = vsel %vm412, %v361, 0
  %v432 = vsel %vm412, %v362, 0
  %v435 = vsel %vm412, %v363, 0
  %437 = vmatprep.subr.mxu0 0.0
  %438 = vmatpush1.msra.mxu0 0.0
  %439 = vmatprep.subr.mxu0 0.0
  %440 = vmatpush1.msra.mxu0 0.0
  %441 = vmatprep.subr.mxu0 0.0
  %442 = vmatpush1.msra.mxu0 0.0
  %443 = vmatprep.subr.mxu0 0.0
  %444 = vmatpush1.msra.mxu0 0.0
  %445 = vmatprep.subr.mxu0 0.0
  %446 = vmatpush1.msra.mxu0 0.0
  %447 = vmatprep.subr.mxu0 0.0
  %448 = vmatpush1.msra.mxu0 0.0
  %449 = vmatprep.subr.mxu0 0.0
  %450 = vmatpush1.msra.mxu0 0.0
  %451 = vmatprep.subr.mxu0 0.0
  %452 = vmatpush1.msra.mxu0 0.0
  %453 = vmatprep.subr.mxu0 %v355
  %454 = vmatpush1.msra.mxu0 %v354
  %455 = vmatprep.subr.mxu0 %v353
  %456 = vmatpush1.msra.mxu0 %v352
  %457 = vmatprep.subr.mxu0 %v351
  %458 = vmatpush1.msra.mxu0 %v350
  %459 = vmatprep.subr.mxu0 %v349
  %460 = vmatpush1.msra.mxu0 %v348
  %461 = vmatprep.subr.mxu0 %v347
  %462 = vmatpush1.msra.mxu0 %v346
  %463 = vmatprep.subr.mxu0 %v345
  %464 = vmatpush1.msra.mxu0 %v344
  %465 = vmatprep.subr.mxu0 %v343
  %466 = vmatpush1.msra.mxu0 %v342
  %467 = vmatprep.subr.mxu0 %v341
  %468 = vmatpush1.msra.mxu0 %v340
  %469 = vmatprep.subr.mxu0 0.0
  %470 = vmatpush2.msra.mxu0 0.0
  %471 = vmatprep.subr.mxu0 0.0
  %472 = vmatpush2.msra.mxu0 0.0
  %473 = vmatprep.subr.mxu0 0.0
  %474 = vmatpush2.msra.mxu0 0.0
  %475 = vmatprep.subr.mxu0 0.0
  %476 = vmatpush2.msra.mxu0 0.0
  %477 = vmatprep.subr.mxu0 0.0
  %478 = vmatpush2.msra.mxu0 0.0
  %479 = vmatprep.subr.mxu0 0.0
  %480 = vmatpush2.msra.mxu0 0.0
  %481 = vmatprep.subr.mxu0 0.0
  %482 = vmatpush2.msra.mxu0 0.0
  %483 = vmatprep.subr.mxu0 0.0
  %484 = vmatpush2.msra.mxu0 0.0
  %485 = vmatprep.subr.mxu0 0.0
  %486 = vmatpush2.msra.mxu0 0.0
  %487 = vmatprep.subr.mxu0 0.0
  %488 = vmatpush2.msra.mxu0 0.0
  %489 = vmatprep.subr.mxu0 0.0
  %490 = vmatpush2.msra.mxu0 0.0
  %491 = vmatprep.subr.mxu0 0.0
  %492 = vmatpush2.msra.mxu0 0.0
  %493 = vmatprep.subr.mxu0 0.0
  %494 = vmatpush2.msra.mxu0 0.0
  %495 = vmatprep.subr.mxu0 0.0
  %496 = vmatpush2.msra.mxu0 0.0
  %497 = vmatprep.subr.mxu0 0.0
  %498 = vmatpush2.msra.mxu0 0.0
  %499 = vmatprep.subr.mxu0 0.0
  %500 = vmatpush2.msra.mxu0 0.0
  %501 = vmatprep.mubr.f32.mxu0 0.0
  %502 = vmatmul.mubr.f32.gmra.mxu0 %v414
  %v503 = vpop.f32.mrf.mxu0
  %v504 = vadd.f32 %v375, %v503
  %v505 = vpop.f32.mrf.mxu0
  %v506 = vadd.f32 %v375, %v505
  %507 = vmatprep.mubr.f32.mxu0 0.0
  %508 = vmatmul.mubr.f32.gmra.mxu0 %v417
  %v509 = vpop.f32.mrf.mxu0
  %v510 = vadd.f32 %v380, %v509
  %v511 = vpop.f32.mrf.mxu0
  %v512 = vadd.f32 %v380, %v511
  %513 = vmatprep.mubr.f32.mxu0 0.0
  %514 = vmatmul.mubr.f32.gmra.mxu0 %v420
  %v515 = vpop.f32.mrf.mxu0
  %v516 = vadd.f32 %v385, %v515
  %v517 = vpop.f32.mrf.mxu0
  %v518 = vadd.f32 %v385, %v517
  %519 = vmatprep.mubr.f32.mxu0 0.0
  %520 = vmatmul.mubr.f32.gmra.mxu0 %v423
  %v521 = vpop.f32.mrf.mxu0
  %v522 = vadd.f32 %v390, %v521
  %v523 = vpop.f32.mrf.mxu0
  %v524 = vadd.f32 %v390, %v523
  %525 = vmatprep.mubr.f32.mxu0 0.0
  %526 = vmatmul.mubr.f32.gmra.mxu0 %v426
  %v527 = vpop.f32.mrf.mxu0
  %v528 = vadd.f32 %v395, %v527
  %v529 = vpop.f32.mrf.mxu0
  %v530 = vadd.f32 %v395, %v529
  %531 = vmatprep.mubr.f32.mxu0 0.0
  %532 = vmatmul.mubr.f32.gmra.mxu0 %v429
  %v533 = vpop.f32.mrf.mxu0
  %v534 = vadd.f32 %v400, %v533
  %v535 = vpop.f32.mrf.mxu0
  %v536 = vadd.f32 %v400, %v535
  %537 = vmatprep.mubr.f32.mxu0 0.0
  %538 = vmatmul.mubr.f32.gmra.mxu0 %v432
  %v539 = vpop.f32.mrf.mxu0
  %v540 = vadd.f32 %v405, %v539
  %v541 = vpop.f32.mrf.mxu0
  %v542 = vadd.f32 %v405, %v541
  %543 = vmatprep.mubr.f32.mxu0 0.0
  %544 = vmatmul.mubr.f32.gmra.mxu0 %v435
  %v545 = vpop.f32.mrf.mxu0
  %v546 = vadd.f32 %v410, %v545
  %v547 = vpop.f32.mrf.mxu0
  %v548 = vadd.f32 %v410, %v547
  %549 = vdwg.mxu0
  %v550 = vtanh.pop %v504
  %v551 = vtanh.pop %v506
  %v552 = vtanh.pop %v510
  %v553 = vtanh.pop %v512
  %v554 = vtanh.pop %v516
  %v555 = vtanh.pop %v518
  %v556 = vtanh.pop %v522
  %v557 = vtanh.pop %v524
  %v558 = vtanh.pop %v528
  %v559 = vtanh.pop %v530
  %v560 = vtanh.pop %v534
  %v561 = vtanh.pop %v536
  %v562 = vtanh.pop %v540
  %v563 = vtanh.pop %v542
  %v564 = vtanh.pop %v546
  %v565 = vtanh.pop %v548
  %v566 = vld [vmem:[%s2 + $0x80] sm:$0xff]
  %v567 = vld [vmem:[%s2 + $0x88] sm:$0xff]
  %v568 = vld [vmem:[%s3 + $0x80] sm:$0xff]
  %v569 = vld [vmem:[%s3 + $0x88] sm:$0xff]
  %571 = vset.pattern.permute.xlu0 0
  %572 = vperm.xlu0 %571, %v568
  %v573 = vpop.permute.xlu0 %572
  %576 = vset.pattern.permute.xlu0 0
  %577 = vperm.xlu0 %576, %v569
  %v578 = vpop.permute.xlu0 %577
  %v581 = vsel %vm412, %v566, 0
  %v584 = vsel %vm412, %v567, 0
  %586 = vmatprep.subr.mxu0 0.0
  %587 = vmatpush1.msra.mxu0 0.0
  %588 = vmatprep.subr.mxu0 0.0
  %589 = vmatpush1.msra.mxu0 0.0
  %590 = vmatprep.subr.mxu0 0.0
  %591 = vmatpush1.msra.mxu0 0.0
  %592 = vmatprep.subr.mxu0 0.0
  %593 = vmatpush1.msra.mxu0 0.0
  %594 = vmatprep.subr.mxu0 0.0
  %595 = vmatpush1.msra.mxu0 0.0
  %596 = vmatprep.subr.mxu0 0.0
  %597 = vmatpush1.msra.mxu0 0.0
  %598 = vmatprep.subr.mxu0 0.0
  %599 = vmatpush1.msra.mxu0 0.0
  %600 = vmatprep.subr.mxu0 0.0
  %601 = vmatpush1.msra.mxu0 0.0
  %602 = vmatprep.subr.mxu0 %v565
  %603 = vmatpush1.msra.mxu0 %v564
  %604 = vmatprep.subr.mxu0 %v563
  %605 = vmatpush1.msra.mxu0 %v562
  %606 = vmatprep.subr.mxu0 %v561
  %607 = vmatpush1.msra.mxu0 %v560
  %608 = vmatprep.subr.mxu0 %v559
  %609 = vmatpush1.msra.mxu0 %v558
  %610 = vmatprep.subr.mxu0 %v557
  %611 = vmatpush1.msra.mxu0 %v556
  %612 = vmatprep.subr.mxu0 %v555
  %613 = vmatpush1.msra.mxu0 %v554
  %614 = vmatprep.subr.mxu0 %v553
  %615 = vmatpush1.msra.mxu0 %v552
  %616 = vmatprep.subr.mxu0 %v551
  %617 = vmatpush1.msra.mxu0 %v550
  %618 = vmatprep.subr.mxu0 0.0
  %619 = vmatpush2.msra.mxu0 0.0
  %620 = vmatprep.subr.mxu0 0.0
  %621 = vmatpush2.msra.mxu0 0.0
  %622 = vmatprep.subr.mxu0 0.0
  %623 = vmatpush2.msra.mxu0 0.0
  %624 = vmatprep.subr.mxu0 0.0
  %625 = vmatpush2.msra.mxu0 0.0
  %626 = vmatprep.subr.mxu0 0.0
  %627 = vmatpush2.msra.mxu0 0.0
  %628 = vmatprep.subr.mxu0 0.0
  %629 = vmatpush2.msra.mxu0 0.0
  %630 = vmatprep.subr.mxu0 0.0
  %631 = vmatpush2.msra.mxu0 0.0
  %632 = vmatprep.subr.mxu0 0.0
  %633 = vmatpush2.msra.mxu0 0.0
  %634 = vmatprep.subr.mxu0 0.0
  %635 = vmatpush2.msra.mxu0 0.0
  %636 = vmatprep.subr.mxu0 0.0
  %637 = vmatpush2.msra.mxu0 0.0
  %638 = vmatprep.subr.mxu0 0.0
  %639 = vmatpush2.msra.mxu0 0.0
  %640 = vmatprep.subr.mxu0 0.0
  %641 = vmatpush2.msra.mxu0 0.0
  %642 = vmatprep.subr.mxu0 0.0
  %643 = vmatpush2.msra.mxu0 0.0
  %644 = vmatprep.subr.mxu0 0.0
  %645 = vmatpush2.msra.mxu0 0.0
  %646 = vmatprep.subr.mxu0 0.0
  %647 = vmatpush2.msra.mxu0 0.0
  %648 = vmatprep.subr.mxu0 0.0
  %649 = vmatpush2.msra.mxu0 0.0
  %650 = vmatprep.mubr.f32.mxu0 0.0
  %651 = vmatmul.mubr.f32.gmra.mxu0 %v581
  %v652 = vpop.f32.mrf.mxu0
  %v653 = vadd.f32 %v573, %v652
  %v654 = vpop.f32.mrf.mxu0
  %v655 = vadd.f32 %v573, %v654
  %656 = vmatprep.mubr.f32.mxu0 0.0
  %657 = vmatmul.mubr.f32.gmra.mxu0 %v584
  %v658 = vpop.f32.mrf.mxu0
  %v659 = vadd.f32 %v578, %v658
  %v660 = vpop.f32.mrf.mxu0
  %v661 = vadd.f32 %v578, %v660
  %662 = vdwg.mxu0
  %vm663 = vcmask 1043456
  %v664 = vsel %vm663, %v653, -inf
  %v665 = vrot.slane %v664, 4
  %v666 = vmax.f32 %v664, %v665
  %v667 = vrot.slane %v666, 2
  %v668 = vmax.f32 %v666, %v667
  %v669 = vrot.slane %v668, 1
  %v670 = vmax.f32 %v668, %v669
  %v671 = vsel %vm663, %v655, -inf
  %v672 = vrot.slane %v671, 4
  %v673 = vmax.f32 %v671, %v672
  %v674 = vrot.slane %v673, 2
  %v675 = vmax.f32 %v673, %v674
  %v676 = vrot.slane %v675, 1
  %v677 = vmax.f32 %v675, %v676
  %v678 = vsub.f32 %v653, %v670
  %v679 = vsub.f32 %v655, %v677
  %v680 = vmul.f32 %v678, 1.442695
  %v681 = vpow.pop %v680
  %v682 = vmul.f32 %v679, 1.442695
  %v683 = vpow.pop %v682
  %v684 = vsel %vm663, %v681, 0.0
  %v685 = vrot.slane %v684, 4
  %v686 = vadd.f32 %v684, %v685
  %v687 = vrot.slane %v686, 2
  %v688 = vadd.f32 %v686, %v687
  %v689 = vrot.slane %v688, 1
  %v690 = vadd.f32 %v688, %v689
  %v691 = vsel %vm663, %v683, 0.0
  %v692 = vrot.slane %v691, 4
  %v693 = vadd.f32 %v691, %v692
  %v694 = vrot.slane %v693, 2
  %v695 = vadd.f32 %v693, %v694
  %v696 = vrot.slane %v695, 1
  %v697 = vadd.f32 %v695, %v696
  %v698 = vlog2.pop %v690
  %v699 = vmul.f32 %v698, 0.6931472
  %v700 = vlog2.pop %v697
  %v701 = vmul.f32 %v700, 0.6931472
  %v702 = vsub.f32 %v678, %v699
  %v703 = vsub.f32 %v679, %v701
  %v704 = vlaneseq
  %v705 = vshrl.u32 %v704, 7
  %v706 = vlaneseq
  %v707 = vshrl.u32 %v706, 7
  %v708 = vsub.s32 0, %v707
  %v709 = vrot.slane %v49, %v708
  %v710 = vlaneseq
  %v711 = vshrl.u32 %v710, 7
  %v712 = vsub.s32 1, %v711
  %v713 = vrot.slane %v49, %v712
  %vm714 = vcmp.eq.s32.totalorder %v705, %v709
  %vm715 = vcmp.eq.s32.totalorder %v705, %v713
  %v716 = vsel %vm714, 1, 0
  %v717 = vsel %vm715, 1, 0
  %v718 = vcvt.s32.f32 %v716
  %v719 = vcvt.s32.f32 %v717
  %v720 = vmul.f32 %v702, %v718
  %v721 = vmul.f32 %v703, %v719
  %v722 = vsel %vm663, %v720, 0.0
  %v723 = vrot.slane %v722, 4
  %v724 = vadd.f32 %v722, %v723
  %v725 = vrot.slane %v724, 2
  %v726 = vadd.f32 %v724, %v725
  %v727 = vrot.slane %v726, 1
  %v728 = vadd.f32 %v726, %v727
  %v729 = vsel %vm663, %v721, 0.0
  %v730 = vrot.slane %v729, 4
  %v731 = vadd.f32 %v729, %v730
  %v732 = vrot.slane %v731, 2
  %v733 = vadd.f32 %v731, %v732
  %v734 = vrot.slane %v733, 1
  %v735 = vadd.f32 %v733, %v734
  %v736 = vrcp.pop %v690
  %v737 = vrcp.pop %v697
  %v738 = vmul.f32 %v690, %v736
  %v739 = vmul.f32 %v697, %v737
  %v740 = vsub.f32 2.0, %v738
  %v741 = vsub.f32 2.0, %v739
  %v742 = vmul.f32 %v736, %v740
  %v743 = vmul.f32 %v737, %v741
  %v744 = vmul.f32 %v681, %v678
  %v745 = vmul.f32 %v683, %v679
  %v746 = vsel %vm663, %v744, 0.0
  %v747 = vrot.slane %v746, 4
  %v748 = vadd.f32 %v746, %v747
  %v749 = vrot.slane %v748, 2
  %v750 = vadd.f32 %v748, %v749
  %v751 = vrot.slane %v750, 1
  %v752 = vadd.f32 %v750, %v751
  %v753 = vsel %vm663, %v745, 0.0
  %v754 = vrot.slane %v753, 4
  %v755 = vadd.f32 %v753, %v754
  %v756 = vrot.slane %v755, 2
  %v757 = vadd.f32 %v755, %v756
  %v758 = vrot.slane %v757, 1
  %v759 = vadd.f32 %v757, %v758
  %v760 = vmul.f32 %v752, %v742
  %v761 = vmul.f32 %v759, %v743
  %v762 = vsub.f32 %v699, %v760
  %v763 = vsub.f32 %v701, %v761
  %v766 = vrot.slane %v659, 7
  %v767 = vrot.slane %v661, 7
  %vm770 = vcmask 1040384
  %v771 = vsel %vm770, %v728, %v766
  %v772 = vsel %vm770, %v735, %v767
  %vm773 = vcmask 1041408
  %v774 = vsel %vm773, %v771, %v762
  %v775 = vsel %vm773, %v772, %v763
  %v778 = vcombine.low %v774, %v775
  %780 = vst [vmem:[%s4] sm:$0x77] %v778
  // Predicated region
  $region18: #{actor_critic_evaluate.1} parent=0 // pred_check
    _
  $region19: #{actor_critic_evaluate.1} parent=0 // pred_check_branch
    %782 = sbr.rel (0) target = $region21
  $region20: #{actor_critic_evaluate.1} parent=0 // pred_region
    _
  $region21: #{actor_critic_evaluate.1} parent=0 // pred_fallthru
    _
  // Predicated region
  $region22: #{actor_critic_evaluate.1} parent=0 // pred_check
    _
  $region23: #{actor_critic_evaluate.1} parent=0 // pred_check_branch
    %784 = sbr.rel (0) target = $region25
  $region24: #{actor_critic_evaluate.1} parent=0 // pred_region
    _
  $region25: #{actor_critic_evaluate.1} parent=0 // pred_fallthru
    _

</llo_original>
